<compile_context>
chip_gen: v6e
topology: v6e:2x2x1
jax: 0.10.0
libtpu: 0.0.40
codegen_flags: <defaults>
</compile_context>

<pallas_src>
import math

import jax
import jax.numpy as jnp
from jax import lax
from jax.experimental import pallas as pl
from jax.experimental.pallas import tpu as pltpu


# Python float -> stays a weak-typed literal inside kernels (nothing captured).
NEG_INF = -1e30


def _round_up(n, m):
    return ((n + m - 1) // m) * m


def _augment_projection(W, att_l, att_r, heads, C):
    """Build augmented params with a per-head 'ones' column.

    W      : [F_in, H*C]     -> W_aug  [F_in, H*(C+1)]  (zero col per head)
    att_l/r: [H, C]          -> block-diag [H*(C+1), H] (zero row at ones col)
    ones_row: [1, H*(C+1)]   with 1.0 at each per-head ones-column position.
    The ones column lets kernel B get the softmax denominator (row-sum of e)
    out of the same MXU matmul that does the aggregation.
    """
    F_in = W.shape[0]
    C1 = C + 1
    W_aug = jnp.zeros((F_in, heads * C1), jnp.float32)
    awl = jnp.zeros((heads * C1, heads), jnp.float32)
    awr = jnp.zeros((heads * C1, heads), jnp.float32)
    ones_row = jnp.zeros((1, heads * C1), jnp.float32)
    for h in range(heads):
        W_aug = W_aug.at[:, h * C1:h * C1 + C].set(W[:, h * C:(h + 1) * C])
        awl = awl.at[h * C1:h * C1 + C, h].set(att_l[h])
        awr = awr.at[h * C1:h * C1 + C, h].set(att_r[h])
        ones_row = ones_row.at[0, h * C1 + C].set(1.0)
    return (W_aug.astype(jnp.bfloat16), ones_row,
            awl.astype(jnp.bfloat16), awr.astype(jnp.bfloat16))


# ---------------------------------------------------------------------------
# Kernel A: linear projection + per-head attention scores (all on the MXU).
# ---------------------------------------------------------------------------
def _project_kernel(x_ref, w_ref, ones_ref, awl_ref, awr_ref,
                    xpa_ref, al_ref, ar_ref):
    xb = x_ref[...].astype(jnp.bfloat16)                               # [tm, F_in]
    xw = jnp.dot(xb, w_ref[...], preferred_element_type=jnp.float32)   # [tm, H*C1]
    xpa = xw + ones_ref[...]            # writes 1.0 into each per-head ones col
    xpa_bf = xpa.astype(jnp.bfloat16)
    xpa_ref[...] = xpa_bf
    # alpha_l / alpha_r for all heads via block-diagonal att matrices (MXU);
    # the ones column hits a zero row so it does not perturb the scores.
    al_ref[...] = jnp.dot(xpa_bf, awl_ref[...], preferred_element_type=jnp.float32)
    ar_ref[...] = jnp.dot(xpa_bf, awr_ref[...], preferred_element_type=jnp.float32)


# ---------------------------------------------------------------------------
# Kernel B: streamed masked-softmax attention + aggregation + fused epilogue.
# ---------------------------------------------------------------------------
def _make_attn_kernel(H, C, concat, negative_slope,
                      apply_norm_elu, apply_log_softmax):
    C1 = C + 1

    def kernel(cnt_ref, ar_ref, alT_ref, xpa_ref, adj_ref, bias_ref, *rest):
        if apply_norm_elu:
            gamma_ref, beta_ref = rest[0], rest[1]
            out_ref, acc_ref, m_ref = rest[2], rest[3], rest[4]
        else:
            out_ref, acc_ref, m_ref = rest[0], rest[1], rest[2]

        i = pl.program_id(0)
        j = pl.program_id(1)
        nj = pl.num_programs(1)

        @pl.when(j == 0)
        def _init():
            acc_ref[...] = jnp.zeros(acc_ref.shape, acc_ref.dtype)
            m_ref[...] = jnp.full(m_ref.shape, NEG_INF, m_ref.dtype)

        # Block sparsity: skip all compute for (row-tile, col-tile) blocks with
        # no edges.  (The adj/xpa tiles are still streamed by BlockSpec, but the
        # dominant VPU/EUP/MXU work is skipped.)
        @pl.when(cnt_ref[i, j] > 0)
        def _compute():
            ar = ar_ref[...]               # [tm, H]    target scores
            alT = alT_ref[...]             # [H, tn]    source scores (lane-dense)
            xpa = xpa_ref[...]             # [tn, H*C1] bf16 per-head feats + ones
            tm = ar.shape[0]
            # Additive mask built once per tile, shared by every head.
            neg = jnp.where(adj_ref[...] > 0, 0.0, NEG_INF)            # [tm, tn]
            m_old = m_ref[...]                                         # [tm, H]
            slope = negative_slope

            m_news, corrs, aggs = [], [], []
            # H is small & static -> unrolled.  (Convert to lax.fori_loop if H
            # grows past ~4 to bound live [tm, tn] temporaries on v7x.)
            for h in range(H):
                logits = ar[:, h:h + 1] + alT[h:h + 1, :]              # [tm, tn]
                logits = jnp.maximum(logits, slope * logits)           # leaky_relu
                masked = logits + neg
                m_h = jnp.max(masked, axis=-1, keepdims=True)          # [tm, 1]
                m_new = jnp.maximum(m_old[:, h:h + 1], m_h)
                e = jnp.exp(masked - m_new)                            # [tm, tn]
                # Aggregation AND the row-sum of e (ones column) in one MXU op.
                agg = jnp.dot(e.astype(jnp.bfloat16),
                              xpa[:, h * C1:(h + 1) * C1],
                              preferred_element_type=jnp.float32)      # [tm, C1]
                m_news.append(m_new)
                corrs.append(jnp.broadcast_to(
                    jnp.exp(m_old[:, h:h + 1] - m_new), (tm, C1)))
                aggs.append(agg)

            corr_full = jnp.concatenate(corrs, axis=-1)                # [tm, H*C1]
            agg_full = jnp.concatenate(aggs, axis=-1)                  # [tm, H*C1]
            # Single full-width read-modify-write (no narrow per-head stores).
            acc_ref[...] = corr_full * acc_ref[...] + agg_full
            m_ref[...] = jnp.concatenate(m_news, axis=-1)              # [tm, H]

        @pl.when(j == nj - 1)
        def _finalize():
            acc = acc_ref[...]
            m = m_ref[...]
            ys = []
            for h in range(H):
                num = acc[:, h * C1:h * C1 + C]                        # [tm, C]
                l = acc[:, h * C1 + C:h * C1 + C1]                     # [tm, 1]
                inv = 1.0 / jnp.maximum(l, 1e-16)
                # Rows with no incoming edges -> zero aggregation, bias only
                # (matches PyG: no messages aggregated).
                inv = jnp.where(m[:, h:h + 1] > -1e29, inv, 0.0)
                ys.append(num * inv)
            if concat:
                y = jnp.concatenate(ys, axis=-1) + bias_ref[...]       # [tm, H*C]
            else:
                y = ys[0]
                for h in range(1, H):
                    y = y + ys[h]
                y = y * (1.0 / H) + bias_ref[...]                      # [tm, C]

            if apply_norm_elu:
                mu = jnp.mean(y, axis=-1, keepdims=True)
                d = y - mu
                var = jnp.mean(d * d, axis=-1, keepdims=True)
                y = d * lax.rsqrt(var + 1e-5)
                y = y * gamma_ref[...] + beta_ref[...]
                # ELU(alpha=1); clamp the exp argument on the untaken branch.
                y = jnp.where(y > 0, y, jnp.exp(jnp.minimum(y, 0.0)) - 1.0)

            if apply_log_softmax:
                mx = jnp.max(y, axis=-1, keepdims=True)
                z = y - mx
                y = z - jnp.log(jnp.sum(jnp.exp(z), axis=-1, keepdims=True))

            out_ref[...] = y.astype(out_ref.dtype)

    return kernel


# ---------------------------------------------------------------------------
# One GATConv layer (+ fused LayerNorm/ELU or log_softmax epilogue).
# ---------------------------------------------------------------------------
def gat_layer(x, adj_i8, counts, W_aug, ones_row, awl_aug, awr_aug, bias,
              gamma, beta, *, heads, out_channels, concat,
              negative_slope=0.2, apply_norm_elu, apply_log_softmax,
              tm=256, tn=1024, vmem_limit_bytes=48 * 1024 * 1024):
    N, F_in = x.shape                       # N is already padded
    H, C = heads, out_channels
    C1 = C + 1
    HC1 = H * C1
    out_dim = H * C if concat else C
    assert N % tm == 0 and N % tn == 0

    # ---- Kernel A: projection + per-head attention scores ----------------
    xpa, al, ar = pl.pallas_call(
        _project_kernel,
        grid=(N // tm,),
        in_specs=[
            pl.BlockSpec((tm, F_in), lambda i: (i, 0)),
            pl.BlockSpec((F_in, HC1), lambda i: (0, 0)),
            pl.BlockSpec((1, HC1), lambda i: (0, 0)),
            pl.BlockSpec((HC1, H), lambda i: (0, 0)),
            pl.BlockSpec((HC1, H), lambda i: (0, 0)),
        ],
        out_specs=[
            pl.BlockSpec((tm, HC1), lambda i: (i, 0)),
            pl.BlockSpec((tm, H), lambda i: (i, 0)),
            pl.BlockSpec((tm, H), lambda i: (i, 0)),
        ],
        out_shape=[
            jax.ShapeDtypeStruct((N, HC1), jnp.bfloat16),
            jax.ShapeDtypeStruct((N, H), jnp.float32),
            jax.ShapeDtypeStruct((N, H), jnp.float32),
        ],
        compiler_params=pltpu.CompilerParams(
            dimension_semantics=("parallel",),
            vmem_limit_bytes=vmem_limit_bytes),
    )(x, W_aug, ones_row, awl_aug, awr_aug)

    # Tiny [N, H] -> [H, N] relayout done once in XLA so kernel B can broadcast
    # source scores along lanes without an in-kernel transpose.
    alT = al.T

    # ---- Kernel B: streamed attention + aggregation + fused epilogue -----
    kernel = _make_attn_kernel(H, C, concat, negative_slope,
                               apply_norm_elu, apply_log_softmax)

    in_specs = [
        pl.BlockSpec((tm, H), lambda i, j, cnt: (i, 0)),       # ar (targets)
        pl.BlockSpec((H, tn), lambda i, j, cnt: (0, j)),       # alT (sources)
        pl.BlockSpec((tn, HC1), lambda i, j, cnt: (j, 0)),     # xpa (sources)
        pl.BlockSpec((tm, tn), lambda i, j, cnt: (i, j)),      # adj tile (int8)
        pl.BlockSpec((1, out_dim), lambda i, j, cnt: (0, 0)),  # bias
    ]
    inputs = [ar, alT, xpa, adj_i8, bias.reshape(1, out_dim)]
    if apply_norm_elu:
        in_specs += [pl.BlockSpec((1, out_dim), lambda i, j, cnt: (0, 0)),
                     pl.BlockSpec((1, out_dim), lambda i, j, cnt: (0, 0))]
        inputs += [gamma.reshape(1, out_dim), beta.reshape(1, out_dim)]

    out_dtype = jnp.bfloat16 if apply_norm_elu else jnp.float32
    out = pl.pallas_call(
        kernel,
        grid_spec=pltpu.PrefetchScalarGridSpec(
            num_scalar_prefetch=1,
            grid=(N // tm, N // tn),
            in_specs=in_specs,
            out_specs=pl.BlockSpec((tm, out_dim), lambda i, j, cnt: (i, 0)),
            scratch_shapes=[
                pltpu.VMEM((tm, HC1), jnp.float32),   # per-head acc + row-sum col
                pltpu.VMEM((tm, H), jnp.float32),     # running max m
            ]),
        out_shape=jax.ShapeDtypeStruct((N, out_dim), out_dtype),
        compiler_params=pltpu.CompilerParams(
            dimension_semantics=("parallel", "arbitrary"),
            vmem_limit_bytes=vmem_limit_bytes),
    )(counts, *inputs)
    return out


# ---------------------------------------------------------------------------
# Full GAT forward (eval mode: dropout = identity; full-graph path).
# ---------------------------------------------------------------------------
def gat_forward(x, adj_i8, conv_params, norm_params, heads, num_layers,
                *, tm=256, tn=1024, vmem_limit_bytes=48 * 1024 * 1024):
    N = x.shape[0]
    # Pad node count so the fixed tiles always divide: avoids the full-extent
    # fallback (huge adj blocks / grid collapse) and keeps >=2 row tiles when
    # possible so v7x's second TensorCore has work.  Padded rows have no edges.
    mult = math.lcm(tm, tn)
    N_pad = _round_up(max(N, mult), mult)
    pad = N_pad - N
    if pad:
        x = jnp.pad(x, ((0, pad), (0, 0)))
        adj_i8 = jnp.pad(adj_i8, ((0, pad), (0, pad)))

    # Per-(row-tile, col-tile) edge counts, scalar-prefetched into SMEM by
    # kernel B so empty tiles skip all compute (graphs are usually very sparse).
    Gi, Gj = N_pad // tm, N_pad // tn
    counts = adj_i8.astype(jnp.int32).reshape(Gi, tm, Gj, tn).sum(axis=(1, 3))

    h = x
    for i, (W_aug, ones_row, awl_aug, awr_aug, bias, C, concat) in enumerate(conv_params):
        last = (i == num_layers - 1)
        gamma, beta = (norm_params[i] if not last else (None, None))
        h = gat_layer(h, adj_i8, counts, W_aug, ones_row, awl_aug, awr_aug,
                      bias, gamma, beta, heads=heads, out_channels=C,
                      concat=concat, apply_norm_elu=not last,
                      apply_log_softmax=last, tm=tm, tn=tn,
                      vmem_limit_bytes=vmem_limit_bytes)
        # TODO(synk): dropout(p=0.5) after ELU skipped — module run in eval mode.
    # TODO(synk): output_node_mask / prime_index sub-selection on the last layer
    # is not implemented; this is the full-graph (full=True) forward path.
    return h[:N]


if __name__ == "__main__":
    key = jax.random.PRNGKey(0)
    keys = jax.random.split(key, 16)

    # Small deterministic example (large enough for a (2, 2) tile grid).
    N = 256
    in_channels, hidden_channels, out_channels = 16, 8, 4
    num_layers, heads = 3, 2

    # adj[i, j] = 1 iff edge from source j to target i (int8 in HBM).
    adj = (jax.random.uniform(keys[0], (N, N)) < 0.1).astype(jnp.int8)
    x = jax.random.normal(keys[1], (N, in_channels), dtype=jnp.float32)

    def glorot(k, shape):
        lim = (6.0 / (shape[-2] + shape[-1])) ** 0.5
        return jax.random.uniform(k, shape, jnp.float32, -lim, lim)

    # Per-layer (in_dim, out_channels, concat) exactly as GAT.__init__ builds them.
    layer_cfg = [(in_channels, hidden_channels, True),
                 (heads * hidden_channels, hidden_channels, True),
                 (heads * hidden_channels, out_channels, False)]

    conv_params = []
    ki = 2
    for (fin, fout, concat) in layer_cfg:
        W = glorot(keys[ki], (fin, heads * fout)); ki += 1
        att_l = glorot(keys[ki], (heads, fout)); ki += 1
        att_r = glorot(keys[ki], (heads, fout)); ki += 1
        W_aug, ones_row, awl_aug, awr_aug = _augment_projection(
            W, att_l, att_r, heads, fout)
        bias = jnp.zeros((heads * fout if concat else fout,), jnp.float32)
        conv_params.append((W_aug, ones_row, awl_aug, awr_aug, bias, fout, concat))

    norm_params = [(jnp.ones((heads * hidden_channels,), jnp.float32),
                    jnp.zeros((heads * hidden_channels,), jnp.float32))
                   for _ in range(num_layers - 1)]

    out = gat_forward(x, adj, conv_params, norm_params, heads, num_layers,
                      tm=128, tn=128)   # small tiles -> (2, 2) grid per layer
    out = jax.block_until_ready(out)
    assert out.shape == (N, out_channels)
    assert bool(jnp.all(jnp.isfinite(out)))
    print("KERNEL_OK")
</pallas_src>

<mosaic_0001>
module attributes {stable_mosaic.version = 11 : i64} {
  func.func @_project_kernel(%arg0: i32, %arg1: memref<128x16xf32, #tpu.memory_space<vmem>>, %arg2: memref<16x18xbf16, #tpu.memory_space<vmem>>, %arg3: memref<1x18xf32, #tpu.memory_space<vmem>>, %arg4: memref<18x2xbf16, #tpu.memory_space<vmem>>, %arg5: memref<18x2xbf16, #tpu.memory_space<vmem>>, %arg6: memref<128x18xbf16, #tpu.memory_space<vmem>>, %arg7: memref<128x2xf32, #tpu.memory_space<vmem>>, %arg8: memref<128x2xf32, #tpu.memory_space<vmem>>) attributes {dimension_semantics = [#tpu.dimension_semantics<parallel>], iteration_bounds = array<i64: 2>, scalar_prefetch = 0 : i64, scratch_operands = 0 : i64, tpu.core_type = #tpu.core_type<tc>, window_params = [{transform_indices = @transform_0, window_bounds = array<i64: 128, 16>}, {pipeline_mode = #tpu.pipeline_mode<synchronous>, transform_indices = @transform_1, window_bounds = array<i64: 16, 18>}, {pipeline_mode = #tpu.pipeline_mode<synchronous>, transform_indices = @transform_2, window_bounds = array<i64: 1, 18>}, {pipeline_mode = #tpu.pipeline_mode<synchronous>, transform_indices = @transform_3, window_bounds = array<i64: 18, 2>}, {pipeline_mode = #tpu.pipeline_mode<synchronous>, transform_indices = @transform_4, window_bounds = array<i64: 18, 2>}, {transform_indices = @transform_5, window_bounds = array<i64: 128, 18>}, {transform_indices = @transform_6, window_bounds = array<i64: 128, 2>}, {transform_indices = @transform_7, window_bounds = array<i64: 128, 2>}]} {
    %c0 = arith.constant 0 : index
    %c0_0 = arith.constant 0 : index
    %0 = vector.load %arg1[%c0, %c0_0] : memref<128x16xf32, #tpu.memory_space<vmem>>, vector<128x16xf32>
    %1 = arith.truncf %0 : vector<128x16xf32> to vector<128x16xbf16>
    %c0_1 = arith.constant 0 : index
    %c0_2 = arith.constant 0 : index
    %2 = vector.load %arg2[%c0_1, %c0_2] : memref<16x18xbf16, #tpu.memory_space<vmem>>, vector<16x18xbf16>
    %cst = arith.constant dense<0.000000e+00> : vector<128x18xf32>
    %3 = tpu.matmul %1, %2, %cst {dimension_numbers = #tpu.dot_dimension_numbers<[1], [0], [0], [1], [0, 0, 1, 1], [], []>} : vector<128x16xbf16>, vector<16x18xbf16>, vector<128x18xf32> -> vector<128x18xf32>
    %c0_3 = arith.constant 0 : index
    %c0_4 = arith.constant 0 : index
    %4 = vector.load %arg3[%c0_3, %c0_4] : memref<1x18xf32, #tpu.memory_space<vmem>>, vector<1x18xf32>
    %5 = vector.broadcast %4 : vector<1x18xf32> to vector<128x18xf32>
    %6 = arith.addf %3, %5 : vector<128x18xf32>
    %7 = arith.truncf %6 : vector<128x18xf32> to vector<128x18xbf16>
    %c0_5 = arith.constant 0 : index
    %c0_6 = arith.constant 0 : index
    %8 = vector.load %arg6[%c0_5, %c0_6] : memref<128x18xbf16, #tpu.memory_space<vmem>>, vector<128x18xbf16>
    tpu.vector_store %arg6[%c0_5, %c0_6], %7 {strides = array<i32>} : memref<128x18xbf16, #tpu.memory_space<vmem>>, vector<128x18xbf16>,
    %c0_7 = arith.constant 0 : index
    %c0_8 = arith.constant 0 : index
    %9 = vector.load %arg4[%c0_7, %c0_8] : memref<18x2xbf16, #tpu.memory_space<vmem>>, vector<18x2xbf16>
    %cst_9 = arith.constant dense<0.000000e+00> : vector<128x2xf32>
    %10 = tpu.matmul %7, %9, %cst_9 {dimension_numbers = #tpu.dot_dimension_numbers<[1], [0], [0], [1], [0, 0, 1, 1], [], []>} : vector<128x18xbf16>, vector<18x2xbf16>, vector<128x2xf32> -> vector<128x2xf32>
    %c0_10 = arith.constant 0 : index
    %c0_11 = arith.constant 0 : index
    %11 = vector.load %arg7[%c0_10, %c0_11] : memref<128x2xf32, #tpu.memory_space<vmem>>, vector<128x2xf32>
    tpu.vector_store %arg7[%c0_10, %c0_11], %10 {strides = array<i32>} : memref<128x2xf32, #tpu.memory_space<vmem>>, vector<128x2xf32>,
    %c0_12 = arith.constant 0 : index
    %c0_13 = arith.constant 0 : index
    %12 = vector.load %arg5[%c0_12, %c0_13] : memref<18x2xbf16, #tpu.memory_space<vmem>>, vector<18x2xbf16>
    %cst_14 = arith.constant dense<0.000000e+00> : vector<128x2xf32>
    %13 = tpu.matmul %7, %12, %cst_14 {dimension_numbers = #tpu.dot_dimension_numbers<[1], [0], [0], [1], [0, 0, 1, 1], [], []>} : vector<128x18xbf16>, vector<18x2xbf16>, vector<128x2xf32> -> vector<128x2xf32>
    %c0_15 = arith.constant 0 : index
    %c0_16 = arith.constant 0 : index
    %14 = vector.load %arg8[%c0_15, %c0_16] : memref<128x2xf32, #tpu.memory_space<vmem>>, vector<128x2xf32>
    tpu.vector_store %arg8[%c0_15, %c0_16], %13 {strides = array<i32>} : memref<128x2xf32, #tpu.memory_space<vmem>>, vector<128x2xf32>,
    return
  }
  func.func @transform_0(%arg0: i32) -> (i32, i32) {
    %c0_i32 = arith.constant 0 : i32
    %c0_i32_0 = arith.constant 0 : i32
    return %arg0, %c0_i32 : i32, i32
  }
  func.func @transform_1(%arg0: i32) -> (i32, i32) {
    %c0_i32 = arith.constant 0 : i32
    %c0_i32_0 = arith.constant 0 : i32
    %c0_i32_1 = arith.constant 0 : i32
    return %c0_i32, %c0_i32_0 : i32, i32
  }
  func.func @transform_2(%arg0: i32) -> (i32, i32) {
    %c0_i32 = arith.constant 0 : i32
    %c0_i32_0 = arith.constant 0 : i32
    %c0_i32_1 = arith.constant 0 : i32
    return %c0_i32, %c0_i32_0 : i32, i32
  }
  func.func @transform_3(%arg0: i32) -> (i32, i32) {
    %c0_i32 = arith.constant 0 : i32
    %c0_i32_0 = arith.constant 0 : i32
    %c0_i32_1 = arith.constant 0 : i32
    return %c0_i32, %c0_i32_0 : i32, i32
  }
  func.func @transform_4(%arg0: i32) -> (i32, i32) {
    %c0_i32 = arith.constant 0 : i32
    %c0_i32_0 = arith.constant 0 : i32
    %c0_i32_1 = arith.constant 0 : i32
    return %c0_i32, %c0_i32_0 : i32, i32
  }
  func.func @transform_5(%arg0: i32) -> (i32, i32) {
    %c0_i32 = arith.constant 0 : i32
    %c0_i32_0 = arith.constant 0 : i32
    return %arg0, %c0_i32 : i32, i32
  }
  func.func @transform_6(%arg0: i32) -> (i32, i32) {
    %c0_i32 = arith.constant 0 : i32
    %c0_i32_0 = arith.constant 0 : i32
    return %arg0, %c0_i32 : i32, i32
  }
  func.func @transform_7(%arg0: i32) -> (i32, i32) {
    %c0_i32 = arith.constant 0 : i32
    %c0_i32_0 = arith.constant 0 : i32
    return %arg0, %c0_i32 : i32, i32
  }
}

</mosaic_0001>

<llo_original>
// kernel: tpu_custom_call.1
$region0: #{tpu_custom_call.1}
  #allocation0 [shape = 'u32[]', space=smem, size = 0x4, offset = 0x4, fixed_abs, tag = 'smem constant byte address 0x4 - core index']
  #allocation1 [shape = 'u32[144,128]{1,0:T(1,128)}', space=vmem, size = 0x12000, scoped, tag = 'internal scratch']
  %s0 = inlined_call_operand.vmem [shape: f32[256,16], index: 0, kind: input, shape index: {}]
  %s1 = inlined_call_operand.vmem [shape: bf16[16,18], index: 1, kind: input, shape index: {}]
  %s2 = inlined_call_operand.vmem [shape: f32[1,18], index: 2, kind: input, shape index: {}]
  %s3 = inlined_call_operand.vmem [shape: bf16[18,2], index: 3, kind: input, shape index: {}]
  %s4 = inlined_call_operand.vmem [shape: bf16[18,2], index: 4, kind: input, shape index: {}]
  %s5 = inlined_call_operand.vmem [shape: bf16[256,18], index: 5, kind: output, shape index: {0}]
  %s6 = inlined_call_operand.vmem [shape: f32[256,2], index: 6, kind: output, shape index: {1}]
  %s7 = inlined_call_operand.vmem [shape: f32[256,2], index: 7, kind: output, shape index: {2}]
  %8 = xla_tuple %s5, %s6, %s7
  %s9 = sld [smem:[#allocation0]]
  $region69: #{tpu_custom_call.1} parent=0
    _
  %s11 = ssub.s32 1, %s9
  %s12 = scalar_select 0, %s11, %s9
  loop: start=0, step=1, limit=4
  $region2: #{tpu_custom_call.1} parent=0 // loop_pre_header
    _
  $region3: #{tpu_custom_call.1} parent=0 // loop_header
    %s14 = sphi 0, %s18
    %p15 = scmp.ge.s32.totalorder %s14, 4
    %s24 = sphi 0, %s26
    %s27 = sphi 0, %s24
    %s28 = sphi 0, %s27
    %s44 = sphi 0, %s28
    %s48 = sphi 0, %s48
    %s50 = sphi 0, %s48
    %s51 = sphi 0, %s50
    %s65 = sphi 0, %s51
    %s69 = sphi 0, %s69
    %s71 = sphi 0, %s69
    %s72 = sphi 0, %s71
    %s86 = sphi 0, %s72
    %s90 = sphi 0, %s90
    %s92 = sphi 0, %s90
    %s93 = sphi 0, %s92
    %s107 = sphi 0, %s93
    %s111 = sphi 0, %s111
    %s113 = sphi 0, %s111
    %s114 = sphi 0, %s113
    %s128 = sphi 0, %s114
    %s134 = sphi 0, %s136
    %s137 = sphi 0, %s134
    %s138 = sphi 0, %s137
    %s154 = sphi 0, %s138
    %s160 = sphi 0, %s162
    %s163 = sphi 0, %s160
    %s164 = sphi 0, %s163
    %s180 = sphi 0, %s164
    %s186 = sphi 0, %s188
    %s189 = sphi 0, %s186
    %s190 = sphi 0, %s189
    %s206 = sphi 0, %s190
  $region4: #{tpu_custom_call.1} parent=0 // loop_header_branch
    %17 = sbr.rel (%p15) target = $region8
  $region5: #{tpu_custom_call.1} parent=0 // loop_body
    %s19 = ssub.s32 %s14, 1
    %s20 = ssub.s32 %s14, 2
    %s21 = sadd.s32 %s14, 1
    %s22 = ssub.s32 %s14, %s21
    %p23 = scmp.eq.s32.totalorder %s22, 0
    %s25 = sadd.s32 %s24, 1
    %s26 = scalar_select %p23, %s24, %s25
    %p29 = pneg %p23
    %p30 = scmp.eq.s32.totalorder %s14, 1
    %p31 = por %p29, %p30
    %p32 = scmp.ne.s32.totalorder %s24, %s27
    %p33 = scmp.eq.s32.totalorder %s14, 0
    %p34 = por %p32, %p33
    %p35 = scmp.ne.s32.totalorder %s24, %s27
    %p36 = scmp.eq.s32.totalorder %s19, 1
    %p37 = por %p35, %p36
    %p38 = scmp.ne.s32.totalorder %s27, %s28
    %p39 = scmp.eq.s32.totalorder %s19, 0
    %p40 = por %p38, %p39
    %p41 = scmp.ne.s32.totalorder %s27, %s28
    %p42 = scmp.eq.s32.totalorder %s20, 1
    %p43 = por %p41, %p42
    %p45 = scmp.ne.s32.totalorder %s28, %s44
    %p46 = scmp.eq.s32.totalorder %s20, 0
    %p47 = por %p45, %p46
    %s49 = sadd.s32 %s48, 1
    %p52 = scmp.eq.s32.totalorder %s14, 1
    %p53 = scmp.ne.s32.totalorder %s48, %s50
    %p54 = scmp.eq.s32.totalorder %s14, 0
    %p55 = por %p53, %p54
    %p56 = scmp.ne.s32.totalorder %s48, %s50
    %p57 = scmp.eq.s32.totalorder %s19, 1
    %p58 = por %p56, %p57
    %p59 = scmp.ne.s32.totalorder %s50, %s51
    %p60 = scmp.eq.s32.totalorder %s19, 0
    %p61 = por %p59, %p60
    %p62 = scmp.ne.s32.totalorder %s50, %s51
    %p63 = scmp.eq.s32.totalorder %s20, 1
    %p64 = por %p62, %p63
    %p66 = scmp.ne.s32.totalorder %s51, %s65
    %p67 = scmp.eq.s32.totalorder %s20, 0
    %p68 = por %p66, %p67
    %s70 = sadd.s32 %s69, 1
    %p73 = scmp.eq.s32.totalorder %s14, 1
    %p74 = scmp.ne.s32.totalorder %s69, %s71
    %p75 = scmp.eq.s32.totalorder %s14, 0
    %p76 = por %p74, %p75
    %p77 = scmp.ne.s32.totalorder %s69, %s71
    %p78 = scmp.eq.s32.totalorder %s19, 1
    %p79 = por %p77, %p78
    %p80 = scmp.ne.s32.totalorder %s71, %s72
    %p81 = scmp.eq.s32.totalorder %s19, 0
    %p82 = por %p80, %p81
    %p83 = scmp.ne.s32.totalorder %s71, %s72
    %p84 = scmp.eq.s32.totalorder %s20, 1
    %p85 = por %p83, %p84
    %p87 = scmp.ne.s32.totalorder %s72, %s86
    %p88 = scmp.eq.s32.totalorder %s20, 0
    %p89 = por %p87, %p88
    %s91 = sadd.s32 %s90, 1
    %p94 = scmp.eq.s32.totalorder %s14, 1
    %p95 = scmp.ne.s32.totalorder %s90, %s92
    %p96 = scmp.eq.s32.totalorder %s14, 0
    %p97 = por %p95, %p96
    %p98 = scmp.ne.s32.totalorder %s90, %s92
    %p99 = scmp.eq.s32.totalorder %s19, 1
    %p100 = por %p98, %p99
    %p101 = scmp.ne.s32.totalorder %s92, %s93
    %p102 = scmp.eq.s32.totalorder %s19, 0
    %p103 = por %p101, %p102
    %p104 = scmp.ne.s32.totalorder %s92, %s93
    %p105 = scmp.eq.s32.totalorder %s20, 1
    %p106 = por %p104, %p105
    %p108 = scmp.ne.s32.totalorder %s93, %s107
    %p109 = scmp.eq.s32.totalorder %s20, 0
    %p110 = por %p108, %p109
    %s112 = sadd.s32 %s111, 1
    %p115 = scmp.eq.s32.totalorder %s14, 1
    %p116 = scmp.ne.s32.totalorder %s111, %s113
    %p117 = scmp.eq.s32.totalorder %s14, 0
    %p118 = por %p116, %p117
    %p119 = scmp.ne.s32.totalorder %s111, %s113
    %p120 = scmp.eq.s32.totalorder %s19, 1
    %p121 = por %p119, %p120
    %p122 = scmp.ne.s32.totalorder %s113, %s114
    %p123 = scmp.eq.s32.totalorder %s19, 0
    %p124 = por %p122, %p123
    %p125 = scmp.ne.s32.totalorder %s113, %s114
    %p126 = scmp.eq.s32.totalorder %s20, 1
    %p127 = por %p125, %p126
    %p129 = scmp.ne.s32.totalorder %s114, %s128
    %p130 = scmp.eq.s32.totalorder %s20, 0
    %p131 = por %p129, %p130
    %s132 = ssub.s32 %s14, %s21
    %p133 = scmp.eq.s32.totalorder %s132, 0
    %s135 = sadd.s32 %s134, 1
    %s136 = scalar_select %p133, %s134, %s135
    %p139 = pneg %p133
    %p140 = scmp.eq.s32.totalorder %s14, 1
    %p141 = por %p139, %p140
    %p142 = scmp.ne.s32.totalorder %s134, %s137
    %p143 = scmp.eq.s32.totalorder %s14, 0
    %p144 = por %p142, %p143
    %p145 = scmp.ne.s32.totalorder %s134, %s137
    %p146 = scmp.eq.s32.totalorder %s19, 1
    %p147 = por %p145, %p146
    %p148 = scmp.ne.s32.totalorder %s137, %s138
    %p149 = scmp.eq.s32.totalorder %s19, 0
    %p150 = por %p148, %p149
    %p151 = scmp.ne.s32.totalorder %s137, %s138
    %p152 = scmp.eq.s32.totalorder %s20, 1
    %p153 = por %p151, %p152
    %p155 = scmp.ne.s32.totalorder %s138, %s154
    %p156 = scmp.eq.s32.totalorder %s20, 0
    %p157 = por %p155, %p156
    %s158 = ssub.s32 %s14, %s21
    %p159 = scmp.eq.s32.totalorder %s158, 0
    %s161 = sadd.s32 %s160, 1
    %s162 = scalar_select %p159, %s160, %s161
    %p165 = pneg %p159
    %p166 = scmp.eq.s32.totalorder %s14, 1
    %p167 = por %p165, %p166
    %p168 = scmp.ne.s32.totalorder %s160, %s163
    %p169 = scmp.eq.s32.totalorder %s14, 0
    %p170 = por %p168, %p169
    %p171 = scmp.ne.s32.totalorder %s160, %s163
    %p172 = scmp.eq.s32.totalorder %s19, 1
    %p173 = por %p171, %p172
    %p174 = scmp.ne.s32.totalorder %s163, %s164
    %p175 = scmp.eq.s32.totalorder %s19, 0
    %p176 = por %p174, %p175
    %p177 = scmp.ne.s32.totalorder %s163, %s164
    %p178 = scmp.eq.s32.totalorder %s20, 1
    %p179 = por %p177, %p178
    %p181 = scmp.ne.s32.totalorder %s164, %s180
    %p182 = scmp.eq.s32.totalorder %s20, 0
    %p183 = por %p181, %p182
    %s184 = ssub.s32 %s14, %s21
    %p185 = scmp.eq.s32.totalorder %s184, 0
    %s187 = sadd.s32 %s186, 1
    %s188 = scalar_select %p185, %s186, %s187
    %p191 = pneg %p185
    %p192 = scmp.eq.s32.totalorder %s14, 1
    %p193 = por %p191, %p192
    %p194 = scmp.ne.s32.totalorder %s186, %s189
    %p195 = scmp.eq.s32.totalorder %s14, 0
    %p196 = por %p194, %p195
    %p197 = scmp.ne.s32.totalorder %s186, %s189
    %p198 = scmp.eq.s32.totalorder %s19, 1
    %p199 = por %p197, %p198
    %p200 = scmp.ne.s32.totalorder %s189, %s190
    %p201 = scmp.eq.s32.totalorder %s19, 0
    %p202 = por %p200, %p201
    %p203 = scmp.ne.s32.totalorder %s189, %s190
    %p204 = scmp.eq.s32.totalorder %s20, 1
    %p205 = por %p203, %p204
    %p207 = scmp.ne.s32.totalorder %s190, %s206
    %p208 = scmp.eq.s32.totalorder %s20, 0
    %p209 = por %p207, %p208
    %p210 = scmp.le.s32.totalorder 1, %s14
    %p211 = scmp.lt.s32.totalorder %s14, 3
    %p212 = pnand %p210, %p211
    %p213 = pneg %p212
    // Predicated region
    $region9: #{tpu_custom_call.1} parent=5 // pred_check
      _
    $region10: #{tpu_custom_call.1} parent=5 // pred_check_branch
      %215 = sbr.rel (%p212) target = $region12
    $region11: #{tpu_custom_call.1} parent=5 // pred_region
      %s216 = ssub.s32 %s14, 1
      // Predicated region
      $region13: #{tpu_custom_call.1} parent=11 // pred_check
        %p217 = pneg %p61
      $region14: #{tpu_custom_call.1} parent=11 // pred_check_branch
        %219 = sbr.rel (%p217) target = $region16
      $region15: #{tpu_custom_call.1} parent=11 // pred_region
        _
      $region16: #{tpu_custom_call.1} parent=11 // pred_fallthru
        _
      // Predicated region
      $region17: #{tpu_custom_call.1} parent=11 // pred_check
        %p220 = pneg %p82
      $region18: #{tpu_custom_call.1} parent=11 // pred_check_branch
        %222 = sbr.rel (%p220) target = $region20
      $region19: #{tpu_custom_call.1} parent=11 // pred_region
        _
      $region20: #{tpu_custom_call.1} parent=11 // pred_fallthru
        _
      // Predicated region
      $region21: #{tpu_custom_call.1} parent=11 // pred_check
        %p223 = pneg %p103
      $region22: #{tpu_custom_call.1} parent=11 // pred_check_branch
        %225 = sbr.rel (%p223) target = $region24
      $region23: #{tpu_custom_call.1} parent=11 // pred_region
        _
      $region24: #{tpu_custom_call.1} parent=11 // pred_fallthru
        _
      // Predicated region
      $region25: #{tpu_custom_call.1} parent=11 // pred_check
        %p226 = pneg %p124
      $region26: #{tpu_custom_call.1} parent=11 // pred_check_branch
        %228 = sbr.rel (%p226) target = $region28
      $region27: #{tpu_custom_call.1} parent=11 // pred_region
        _
      $region28: #{tpu_custom_call.1} parent=11 // pred_fallthru
        _
    $region12: #{tpu_custom_call.1} parent=5 // pred_fallthru
      _
    %p229 = scmp.lt.s32.totalorder %s14, 2
    // Predicated region
    $region29: #{tpu_custom_call.1} parent=5 // pred_check
      %p230 = pneg %p229
    $region30: #{tpu_custom_call.1} parent=5 // pred_check_branch
      %232 = sbr.rel (%p230) target = $region32
    $region31: #{tpu_custom_call.1} parent=5 // pred_region
      // Predicated region
      $region33: #{tpu_custom_call.1} parent=31 // pred_check
        %p233 = pneg %p34
      $region34: #{tpu_custom_call.1} parent=31 // pred_check_branch
        %235 = sbr.rel (%p233) target = $region36
      $region35: #{tpu_custom_call.1} parent=31 // pred_region
        %s236 = smul.u32 16, %s14
        %p237 = scmp.lt.s32.totalorder %s236, 31
        %s238 = scalar_select %p237, %s236, 31
        %s239 = smul.addr %s238, 8
        %s240 = scalar_lea.vmem %s0, %s239
        %s241 = smul.u32 16, %s14
      $region36: #{tpu_custom_call.1} parent=31 // pred_fallthru
        _
    $region32: #{tpu_custom_call.1} parent=5 // pred_fallthru
      _
    %p242 = scmp.le.s32.totalorder 1, %s14
    %p243 = scmp.lt.s32.totalorder %s14, 3
    %p244 = pnand %p242, %p243
    %p245 = pneg %p244
    // Predicated region
    $region37: #{tpu_custom_call.1} parent=5 // pred_check
      _
    $region38: #{tpu_custom_call.1} parent=5 // pred_check_branch
      %247 = sbr.rel (%p244) target = $region40
    $region39: #{tpu_custom_call.1} parent=5 // pred_region
      %s248 = ssub.s32 %s14, 1
      %s249 = smul.u32 16, %s19
      %p250 = scmp.lt.s32.totalorder %s249, 31
      %s251 = scalar_select %p250, %s249, 31
      %s252 = smul.addr %s251, 8
      %s253 = scalar_lea.vmem %s0, %s252
      %p254 = pneg %p40
      %p255 = pneg %p37
      %p256 = pneg %p61
      %p257 = pneg %p58
      %p258 = pneg %p82
      %p259 = pneg %p79
      %p260 = pneg %p103
      %p261 = pneg %p100
      %p262 = pneg %p124
      %p263 = pneg %p121
      %p264 = pneg %p150
      %p265 = pneg %p147
      %s266 = smul.u32 16, %s19
      %p267 = scmp.lt.s32.totalorder %s266, 31
      %s268 = scalar_select %p267, %s266, 31
      %s269 = smul.addr %s268, 4
      %s270 = scalar_lea.vmem %s5, %s269
      %p271 = pneg %p176
      %p272 = pneg %p173
      %s273 = smul.u32 16, %s19
      %p274 = scmp.lt.s32.totalorder %s273, 31
      %s275 = scalar_select %p274, %s273, 31
      %s276 = smul.addr %s275, 8
      %s277 = scalar_lea.vmem %s6, %s276
      %p278 = pneg %p202
      %p279 = pneg %p199
      %s280 = smul.u32 16, %s19
      %p281 = scmp.lt.s32.totalorder %s280, 31
      %s282 = scalar_select %p281, %s280, 31
      %s283 = smul.addr %s282, 8
      %s284 = scalar_lea.vmem %s7, %s283
      %s285 = smul.u32 16, %s19
      %p286 = scmp.lt.s32.totalorder %s285, 31
      %s287 = scalar_select %p286, %s285, 31
      %s288 = smul.addr %s287, 8
      %s289 = scalar_lea.vmem %s0, %s288
      %s290 = smul.u32 16, %s19
      %s291 = smul.u32 16, %s19
      %p292 = scmp.lt.s32.totalorder %s291, 31
      %s293 = scalar_select %p292, %s291, 31
      %s294 = smul.addr %s293, 4
      %s295 = scalar_lea.vmem %s5, %s294
      %s296 = smul.u32 16, %s19
      %s297 = smul.u32 16, %s19
      %p298 = scmp.lt.s32.totalorder %s297, 31
      %s299 = scalar_select %p298, %s297, 31
      %s300 = smul.addr %s299, 8
      %s301 = scalar_lea.vmem %s6, %s300
      %s302 = smul.u32 16, %s19
      %s303 = smul.u32 16, %s19
      %p304 = scmp.lt.s32.totalorder %s303, 31
      %s305 = scalar_select %p304, %s303, 31
      %s306 = smul.addr %s305, 8
      %s307 = scalar_lea.vmem %s7, %s306
      %s308 = smul.u32 16, %s19
      %v310 = vld [vmem:[%s289] sm:$0xff]
      %v311 = vld [vmem:[%s289 + $0x8] sm:$0xff]
      %v312 = vld [vmem:[%s289 + $0x10] sm:$0xff]
      %v313 = vld [vmem:[%s289 + $0x18] sm:$0xff]
      %v314 = vld [vmem:[%s289 + $0x20] sm:$0xff]
      %v315 = vld [vmem:[%s289 + $0x28] sm:$0xff]
      %v316 = vld [vmem:[%s289 + $0x30] sm:$0xff]
      %v317 = vld [vmem:[%s289 + $0x38] sm:$0xff]
      %v318 = vld [vmem:[%s289 + $0x40] sm:$0xff]
      %v319 = vld [vmem:[%s289 + $0x48] sm:$0xff]
      %v320 = vld [vmem:[%s289 + $0x50] sm:$0xff]
      %v321 = vld [vmem:[%s289 + $0x58] sm:$0xff]
      %v322 = vld [vmem:[%s289 + $0x60] sm:$0xff]
      %v323 = vld [vmem:[%s289 + $0x68] sm:$0xff]
      %v324 = vld [vmem:[%s289 + $0x70] sm:$0xff]
      %v325 = vld [vmem:[%s289 + $0x78] sm:$0xff]
      %v326 = vpack.c.bf16 %v311, %v310
      %v327 = vpack.c.bf16 %v313, %v312
      %v328 = vpack.c.bf16 %v315, %v314
      %v329 = vpack.c.bf16 %v317, %v316
      %v330 = vpack.c.bf16 %v319, %v318
      %v331 = vpack.c.bf16 %v321, %v320
      %v332 = vpack.c.bf16 %v323, %v322
      %v333 = vpack.c.bf16 %v325, %v324
      %v334 = vld [vmem:[%s1] sm:$0xf]
      %v335 = vld [vmem:[%s1 + $0x4] sm:$0xf]
      %v336 = vld [vmem:[%s2] sm:$0x1]
      %v338 = vlaneseq
      %v339 = vshrl.u32 %v338, 7
      %v340 = vsub.s32 0, %v339
      %v341 = vrot.slane %v336, %v340
      %v345 = vunpack.c.l.b16 %v334
      %v346 = vunpack.c.l.b16 %v335
      %v347 = vpack.c.b16 %v346, %v345
      %vm349 = vcmask 130048
      %v351 = vsel %vm349, %v326, 0
      %v354 = vsel %vm349, %v327, 0
      %v357 = vsel %vm349, %v328, 0
      %v360 = vsel %vm349, %v329, 0
      %v363 = vsel %vm349, %v330, 0
      %v366 = vsel %vm349, %v331, 0
      %v369 = vsel %vm349, %v332, 0
      %v372 = vsel %vm349, %v333, 0
      %374 = vmatprep.subr.bf16.mxu0 0
      %375 = vmatpush1.bf16.msra.mxu0 0
      %376 = vmatprep.subr.bf16.mxu0 0
      %377 = vmatpush1.bf16.msra.mxu0 0
      %378 = vmatprep.subr.bf16.mxu0 0
      %379 = vmatpush1.bf16.msra.mxu0 0
      %380 = vmatprep.subr.bf16.mxu0 0
      %381 = vmatpush1.bf16.msra.mxu0 0
      %382 = vmatprep.subr.bf16.mxu0 0
      %383 = vmatpush1.bf16.msra.mxu0 0
      %384 = vmatprep.subr.bf16.mxu0 0
      %385 = vmatpush1.bf16.msra.mxu0 0
      %386 = vmatprep.subr.bf16.mxu0 0
      %387 = vmatpush1.bf16.msra.mxu0 0
      %388 = vmatprep.subr.bf16.mxu0 0
      %389 = vmatpush1.bf16.msra.mxu0 %v347
      %390 = vmatprep.subr.bf16.mxu0 0
      %391 = vmatpush2.bf16.msra.mxu0 0
      %392 = vmatprep.subr.bf16.mxu0 0
      %393 = vmatpush2.bf16.msra.mxu0 0
      %394 = vmatprep.subr.bf16.mxu0 0
      %395 = vmatpush2.bf16.msra.mxu0 0
      %396 = vmatprep.subr.bf16.mxu0 0
      %397 = vmatpush2.bf16.msra.mxu0 0
      %398 = vmatprep.subr.bf16.mxu0 0
      %399 = vmatpush2.bf16.msra.mxu0 0
      %400 = vmatprep.subr.bf16.mxu0 0
      %401 = vmatpush2.bf16.msra.mxu0 0
      %402 = vmatprep.subr.bf16.mxu0 0
      %403 = vmatpush2.bf16.msra.mxu0 0
      %404 = vmatprep.subr.bf16.mxu0 0
      %405 = vmatpush2.bf16.msra.mxu0 0
      %406 = vmatprep.mubr.bf16.mxu0 0
      %407 = vmatmul.mubr.bf16.gmra.mxu0 %v351
      %v408 = vpop.f32.mrf.mxu0
      %v409 = vadd.f32 %v341, %v408
      %v410 = vpop.f32.mrf.mxu0
      %v411 = vpop.f32.mrf.mxu0
      %v412 = vadd.f32 %v341, %v411
      %v413 = vpop.f32.mrf.mxu0
      %414 = vmatprep.mubr.bf16.mxu0 0
      %415 = vmatmul.mubr.bf16.gmra.mxu0 %v354
      %v416 = vpop.f32.mrf.mxu0
      %v417 = vadd.f32 %v341, %v416
      %v418 = vpop.f32.mrf.mxu0
      %v419 = vpop.f32.mrf.mxu0
      %v420 = vadd.f32 %v341, %v419
      %v421 = vpop.f32.mrf.mxu0
      %422 = vmatprep.mubr.bf16.mxu0 0
      %423 = vmatmul.mubr.bf16.gmra.mxu0 %v357
      %v424 = vpop.f32.mrf.mxu0
      %v425 = vadd.f32 %v341, %v424
      %v426 = vpop.f32.mrf.mxu0
      %v427 = vpop.f32.mrf.mxu0
      %v428 = vadd.f32 %v341, %v427
      %v429 = vpop.f32.mrf.mxu0
      %430 = vmatprep.mubr.bf16.mxu0 0
      %431 = vmatmul.mubr.bf16.gmra.mxu0 %v360
      %v432 = vpop.f32.mrf.mxu0
      %v433 = vadd.f32 %v341, %v432
      %v434 = vpop.f32.mrf.mxu0
      %v435 = vpop.f32.mrf.mxu0
      %v436 = vadd.f32 %v341, %v435
      %v437 = vpop.f32.mrf.mxu0
      %438 = vmatprep.mubr.bf16.mxu0 0
      %439 = vmatmul.mubr.bf16.gmra.mxu0 %v363
      %v440 = vpop.f32.mrf.mxu0
      %v441 = vadd.f32 %v341, %v440
      %v442 = vpop.f32.mrf.mxu0
      %v443 = vpop.f32.mrf.mxu0
      %v444 = vadd.f32 %v341, %v443
      %v445 = vpop.f32.mrf.mxu0
      %446 = vmatprep.mubr.bf16.mxu0 0
      %447 = vmatmul.mubr.bf16.gmra.mxu0 %v366
      %v448 = vpop.f32.mrf.mxu0
      %v449 = vadd.f32 %v341, %v448
      %v450 = vpop.f32.mrf.mxu0
      %v451 = vpop.f32.mrf.mxu0
      %v452 = vadd.f32 %v341, %v451
      %v453 = vpop.f32.mrf.mxu0
      %454 = vmatprep.mubr.bf16.mxu0 0
      %455 = vmatmul.mubr.bf16.gmra.mxu0 %v369
      %v456 = vpop.f32.mrf.mxu0
      %v457 = vadd.f32 %v341, %v456
      %v458 = vpop.f32.mrf.mxu0
      %v459 = vpop.f32.mrf.mxu0
      %v460 = vadd.f32 %v341, %v459
      %v461 = vpop.f32.mrf.mxu0
      %462 = vmatprep.mubr.bf16.mxu0 0
      %463 = vmatmul.mubr.bf16.gmra.mxu0 %v372
      %v464 = vpop.f32.mrf.mxu0
      %v465 = vadd.f32 %v341, %v464
      %v466 = vpop.f32.mrf.mxu0
      %v467 = vpop.f32.mrf.mxu0
      %v468 = vadd.f32 %v341, %v467
      %v469 = vpop.f32.mrf.mxu0
      %470 = vdwg.mxu0
      %v471 = vpack.c.bf16 %v412, %v409
      %v472 = vpack.c.bf16 %v420, %v417
      %v473 = vpack.c.bf16 %v428, %v425
      %v474 = vpack.c.bf16 %v436, %v433
      %v475 = vpack.c.bf16 %v444, %v441
      %v476 = vpack.c.bf16 %v452, %v449
      %v477 = vpack.c.bf16 %v460, %v457
      %v478 = vpack.c.bf16 %v468, %v465
      %v487 = vunpack.c.l.b16 %v471
      %v488 = vunpack.c.h.b16 %v471
      %v489 = vunpack.c.l.b16 %v472
      %v490 = vunpack.c.h.b16 %v472
      %v491 = vunpack.c.l.b16 %v473
      %v492 = vunpack.c.h.b16 %v473
      %v493 = vunpack.c.l.b16 %v474
      %v494 = vunpack.c.h.b16 %v474
      %v495 = vunpack.c.l.b16 %v475
      %v496 = vunpack.c.h.b16 %v475
      %v497 = vunpack.c.l.b16 %v476
      %v498 = vunpack.c.h.b16 %v476
      %v499 = vunpack.c.l.b16 %v477
      %v500 = vunpack.c.h.b16 %v477
      %v501 = vunpack.c.l.b16 %v478
      %v502 = vunpack.c.h.b16 %v478
      %v503 = vpack.c.b16 %v487, %v487
      %v504 = vpack.c.b16 %v488, %v488
      %v505 = vpack.c.b16 %v489, %v489
      %v506 = vpack.c.b16 %v490, %v490
      %v507 = vpack.c.b16 %v491, %v491
      %v508 = vpack.c.b16 %v492, %v492
      %v509 = vpack.c.b16 %v493, %v493
      %v510 = vpack.c.b16 %v494, %v494
      %v511 = vpack.c.b16 %v495, %v495
      %v512 = vpack.c.b16 %v496, %v496
      %v513 = vpack.c.b16 %v497, %v497
      %v514 = vpack.c.b16 %v498, %v498
      %v515 = vpack.c.b16 %v499, %v499
      %v516 = vpack.c.b16 %v500, %v500
      %v517 = vpack.c.b16 %v501, %v501
      %v518 = vpack.c.b16 %v502, %v502
      %vm535 = vcmask 142336
      %536 = vst.msk [vmem:[%s295] sm:$0xf] %vm535, %v503
      %537 = vst.msk [vmem:[%s295 + $0x4] sm:$0xf] %vm535, %v504
      %538 = vst.msk [vmem:[%s295 + $0x8] sm:$0xf] %vm535, %v505
      %539 = vst.msk [vmem:[%s295 + $0xc] sm:$0xf] %vm535, %v506
      %540 = vst.msk [vmem:[%s295 + $0x10] sm:$0xf] %vm535, %v507
      %541 = vst.msk [vmem:[%s295 + $0x14] sm:$0xf] %vm535, %v508
      %542 = vst.msk [vmem:[%s295 + $0x18] sm:$0xf] %vm535, %v509
      %543 = vst.msk [vmem:[%s295 + $0x1c] sm:$0xf] %vm535, %v510
      %544 = vst.msk [vmem:[%s295 + $0x20] sm:$0xf] %vm535, %v511
      %545 = vst.msk [vmem:[%s295 + $0x24] sm:$0xf] %vm535, %v512
      %546 = vst.msk [vmem:[%s295 + $0x28] sm:$0xf] %vm535, %v513
      %547 = vst.msk [vmem:[%s295 + $0x2c] sm:$0xf] %vm535, %v514
      %548 = vst.msk [vmem:[%s295 + $0x30] sm:$0xf] %vm535, %v515
      %549 = vst.msk [vmem:[%s295 + $0x34] sm:$0xf] %vm535, %v516
      %550 = vst.msk [vmem:[%s295 + $0x38] sm:$0xf] %vm535, %v517
      %551 = vst.msk [vmem:[%s295 + $0x3c] sm:$0xf] %vm535, %v518
      %v552 = vld [vmem:[%s3] sm:$0xf]
      %v553 = vld [vmem:[%s3 + $0x4] sm:$0xf]
      %v554 = vld [vmem:[%s3 + $0x8] sm:$0x1]
      %v558 = vunpack.c.l.b16 %v552
      %v559 = vunpack.c.l.b16 %v553
      %v560 = vunpack.c.l.b16 %v554
      %v561 = vpack.c.b16 %v559, %v558
      %v562 = vpack.c.b16 %v560, %v560
      %vm564 = vcmask 146432
      %v566 = vsel %vm564, %v471, 0
      %v569 = vsel %vm564, %v472, 0
      %v572 = vsel %vm564, %v473, 0
      %v575 = vsel %vm564, %v474, 0
      %v578 = vsel %vm564, %v475, 0
      %v581 = vsel %vm564, %v476, 0
      %v584 = vsel %vm564, %v477, 0
      %v587 = vsel %vm564, %v478, 0
      %vm589 = vcmask 1040384
      %v591 = vsel %vm589, %v562, 0
      %593 = vmatprep.subr.bf16.mxu0 0
      %594 = vmatpush1.bf16.msra.mxu0 0
      %595 = vmatprep.subr.bf16.mxu0 0
      %596 = vmatpush1.bf16.msra.mxu0 0
      %597 = vmatprep.subr.bf16.mxu0 0
      %598 = vmatpush1.bf16.msra.mxu0 0
      %599 = vmatprep.subr.bf16.mxu0 0
      %600 = vmatpush1.bf16.msra.mxu0 0
      %601 = vmatprep.subr.bf16.mxu0 0
      %602 = vmatpush1.bf16.msra.mxu0 0
      %603 = vmatprep.subr.bf16.mxu0 0
      %604 = vmatpush1.bf16.msra.mxu0 0
      %605 = vmatprep.subr.bf16.mxu0 0
      %606 = vmatpush1.bf16.msra.mxu0 %v591
      %607 = vmatprep.subr.bf16.mxu0 0
      %608 = vmatpush1.bf16.msra.mxu0 %v561
      %609 = vmatprep.subr.bf16.mxu0 0
      %610 = vmatpush2.bf16.msra.mxu0 0
      %611 = vmatprep.subr.bf16.mxu0 0
      %612 = vmatpush2.bf16.msra.mxu0 0
      %613 = vmatprep.subr.bf16.mxu0 0
      %614 = vmatpush2.bf16.msra.mxu0 0
      %615 = vmatprep.subr.bf16.mxu0 0
      %616 = vmatpush2.bf16.msra.mxu0 0
      %617 = vmatprep.subr.bf16.mxu0 0
      %618 = vmatpush2.bf16.msra.mxu0 0
      %619 = vmatprep.subr.bf16.mxu0 0
      %620 = vmatpush2.bf16.msra.mxu0 0
      %621 = vmatprep.subr.bf16.mxu0 0
      %622 = vmatpush2.bf16.msra.mxu0 0
      %623 = vmatprep.subr.bf16.mxu0 0
      %624 = vmatpush2.bf16.msra.mxu0 0
      %625 = vmatprep.mubr.bf16.mxu0 0
      %626 = vmatmul.mubr.bf16.gmra.mxu0 %v566
      %v627 = vpop.f32.mrf.mxu0
      %v628 = vadd.f32 0.0, %v627
      %v629 = vpop.f32.mrf.mxu0
      %v630 = vpop.f32.mrf.mxu0
      %v631 = vadd.f32 0.0, %v630
      %v632 = vpop.f32.mrf.mxu0
      %633 = vmatprep.mubr.bf16.mxu0 0
      %634 = vmatmul.mubr.bf16.gmra.mxu0 %v569
      %v635 = vpop.f32.mrf.mxu0
      %v636 = vadd.f32 0.0, %v635
      %v637 = vpop.f32.mrf.mxu0
      %v638 = vpop.f32.mrf.mxu0
      %v639 = vadd.f32 0.0, %v638
      %v640 = vpop.f32.mrf.mxu0
      %641 = vmatprep.mubr.bf16.mxu0 0
      %642 = vmatmul.mubr.bf16.gmra.mxu0 %v572
      %v643 = vpop.f32.mrf.mxu0
      %v644 = vadd.f32 0.0, %v643
      %v645 = vpop.f32.mrf.mxu0
      %v646 = vpop.f32.mrf.mxu0
      %v647 = vadd.f32 0.0, %v646
      %v648 = vpop.f32.mrf.mxu0
      %649 = vmatprep.mubr.bf16.mxu0 0
      %650 = vmatmul.mubr.bf16.gmra.mxu0 %v575
      %v651 = vpop.f32.mrf.mxu0
      %v652 = vadd.f32 0.0, %v651
      %v653 = vpop.f32.mrf.mxu0
      %v654 = vpop.f32.mrf.mxu0
      %v655 = vadd.f32 0.0, %v654
      %v656 = vpop.f32.mrf.mxu0
      %657 = vmatprep.mubr.bf16.mxu0 0
      %658 = vmatmul.mubr.bf16.gmra.mxu0 %v578
      %v659 = vpop.f32.mrf.mxu0
      %v660 = vadd.f32 0.0, %v659
      %v661 = vpop.f32.mrf.mxu0
      %v662 = vpop.f32.mrf.mxu0
      %v663 = vadd.f32 0.0, %v662
      %v664 = vpop.f32.mrf.mxu0
      %665 = vmatprep.mubr.bf16.mxu0 0
      %666 = vmatmul.mubr.bf16.gmra.mxu0 %v581
      %v667 = vpop.f32.mrf.mxu0
      %v668 = vadd.f32 0.0, %v667
      %v669 = vpop.f32.mrf.mxu0
      %v670 = vpop.f32.mrf.mxu0
      %v671 = vadd.f32 0.0, %v670
      %v672 = vpop.f32.mrf.mxu0
      %673 = vmatprep.mubr.bf16.mxu0 0
      %674 = vmatmul.mubr.bf16.gmra.mxu0 %v584
      %v675 = vpop.f32.mrf.mxu0
      %v676 = vadd.f32 0.0, %v675
      %v677 = vpop.f32.mrf.mxu0
      %v678 = vpop.f32.mrf.mxu0
      %v679 = vadd.f32 0.0, %v678
      %v680 = vpop.f32.mrf.mxu0
      %681 = vmatprep.mubr.bf16.mxu0 0
      %682 = vmatmul.mubr.bf16.gmra.mxu0 %v587
      %v683 = vpop.f32.mrf.mxu0
      %v684 = vadd.f32 0.0, %v683
      %v685 = vpop.f32.mrf.mxu0
      %v686 = vpop.f32.mrf.mxu0
      %v687 = vadd.f32 0.0, %v686
      %v688 = vpop.f32.mrf.mxu0
      %689 = vdwg.mxu0
      %vm690 = vcmask 15360
      %691 = vst.msk [vmem:[%s301] sm:$0xff] %vm690, %v628
      %692 = vst.msk [vmem:[%s301 + $0x8] sm:$0xff] %vm690, %v631
      %693 = vst.msk [vmem:[%s301 + $0x10] sm:$0xff] %vm690, %v636
      %694 = vst.msk [vmem:[%s301 + $0x18] sm:$0xff] %vm690, %v639
      %695 = vst.msk [vmem:[%s301 + $0x20] sm:$0xff] %vm690, %v644
      %696 = vst.msk [vmem:[%s301 + $0x28] sm:$0xff] %vm690, %v647
      %697 = vst.msk [vmem:[%s301 + $0x30] sm:$0xff] %vm690, %v652
      %698 = vst.msk [vmem:[%s301 + $0x38] sm:$0xff] %vm690, %v655
      %699 = vst.msk [vmem:[%s301 + $0x40] sm:$0xff] %vm690, %v660
      %700 = vst.msk [vmem:[%s301 + $0x48] sm:$0xff] %vm690, %v663
      %701 = vst.msk [vmem:[%s301 + $0x50] sm:$0xff] %vm690, %v668
      %702 = vst.msk [vmem:[%s301 + $0x58] sm:$0xff] %vm690, %v671
      %703 = vst.msk [vmem:[%s301 + $0x60] sm:$0xff] %vm690, %v676
      %704 = vst.msk [vmem:[%s301 + $0x68] sm:$0xff] %vm690, %v679
      %705 = vst.msk [vmem:[%s301 + $0x70] sm:$0xff] %vm690, %v684
      %706 = vst.msk [vmem:[%s301 + $0x78] sm:$0xff] %vm690, %v687
      %v707 = vld [vmem:[%s4] sm:$0xf]
      %v708 = vld [vmem:[%s4 + $0x4] sm:$0xf]
      %v709 = vld [vmem:[%s4 + $0x8] sm:$0x1]
      %v713 = vunpack.c.l.b16 %v707
      %v714 = vunpack.c.l.b16 %v708
      %v715 = vunpack.c.l.b16 %v709
      %v716 = vpack.c.b16 %v714, %v713
      %v717 = vpack.c.b16 %v715, %v715
      %v720 = vsel %vm589, %v717, 0
      %722 = vmatprep.subr.bf16.mxu0 0
      %723 = vmatpush1.bf16.msra.mxu0 0
      %724 = vmatprep.subr.bf16.mxu0 0
      %725 = vmatpush1.bf16.msra.mxu0 0
      %726 = vmatprep.subr.bf16.mxu0 0
      %727 = vmatpush1.bf16.msra.mxu0 0
      %728 = vmatprep.subr.bf16.mxu0 0
      %729 = vmatpush1.bf16.msra.mxu0 0
      %730 = vmatprep.subr.bf16.mxu0 0
      %731 = vmatpush1.bf16.msra.mxu0 0
      %732 = vmatprep.subr.bf16.mxu0 0
      %733 = vmatpush1.bf16.msra.mxu0 0
      %734 = vmatprep.subr.bf16.mxu0 0
      %735 = vmatpush1.bf16.msra.mxu0 %v720
      %736 = vmatprep.subr.bf16.mxu0 0
      %737 = vmatpush1.bf16.msra.mxu0 %v716
      %738 = vmatprep.subr.bf16.mxu0 0
      %739 = vmatpush2.bf16.msra.mxu0 0
      %740 = vmatprep.subr.bf16.mxu0 0
      %741 = vmatpush2.bf16.msra.mxu0 0
      %742 = vmatprep.subr.bf16.mxu0 0
      %743 = vmatpush2.bf16.msra.mxu0 0
      %744 = vmatprep.subr.bf16.mxu0 0
      %745 = vmatpush2.bf16.msra.mxu0 0
      %746 = vmatprep.subr.bf16.mxu0 0
      %747 = vmatpush2.bf16.msra.mxu0 0
      %748 = vmatprep.subr.bf16.mxu0 0
      %749 = vmatpush2.bf16.msra.mxu0 0
      %750 = vmatprep.subr.bf16.mxu0 0
      %751 = vmatpush2.bf16.msra.mxu0 0
      %752 = vmatprep.subr.bf16.mxu0 0
      %753 = vmatpush2.bf16.msra.mxu0 0
      %754 = vmatprep.mubr.bf16.mxu0 0
      %755 = vmatmul.mubr.bf16.gmra.mxu0 %v566
      %v756 = vpop.f32.mrf.mxu0
      %v757 = vadd.f32 0.0, %v756
      %v758 = vpop.f32.mrf.mxu0
      %v759 = vpop.f32.mrf.mxu0
      %v760 = vadd.f32 0.0, %v759
      %v761 = vpop.f32.mrf.mxu0
      %762 = vmatprep.mubr.bf16.mxu0 0
      %763 = vmatmul.mubr.bf16.gmra.mxu0 %v569
      %v764 = vpop.f32.mrf.mxu0
      %v765 = vadd.f32 0.0, %v764
      %v766 = vpop.f32.mrf.mxu0
      %v767 = vpop.f32.mrf.mxu0
      %v768 = vadd.f32 0.0, %v767
      %v769 = vpop.f32.mrf.mxu0
      %770 = vmatprep.mubr.bf16.mxu0 0
      %771 = vmatmul.mubr.bf16.gmra.mxu0 %v572
      %v772 = vpop.f32.mrf.mxu0
      %v773 = vadd.f32 0.0, %v772
      %v774 = vpop.f32.mrf.mxu0
      %v775 = vpop.f32.mrf.mxu0
      %v776 = vadd.f32 0.0, %v775
      %v777 = vpop.f32.mrf.mxu0
      %778 = vmatprep.mubr.bf16.mxu0 0
      %779 = vmatmul.mubr.bf16.gmra.mxu0 %v575
      %v780 = vpop.f32.mrf.mxu0
      %v781 = vadd.f32 0.0, %v780
      %v782 = vpop.f32.mrf.mxu0
      %v783 = vpop.f32.mrf.mxu0
      %v784 = vadd.f32 0.0, %v783
      %v785 = vpop.f32.mrf.mxu0
      %786 = vmatprep.mubr.bf16.mxu0 0
      %787 = vmatmul.mubr.bf16.gmra.mxu0 %v578
      %v788 = vpop.f32.mrf.mxu0
      %v789 = vadd.f32 0.0, %v788
      %v790 = vpop.f32.mrf.mxu0
      %v791 = vpop.f32.mrf.mxu0
      %v792 = vadd.f32 0.0, %v791
      %v793 = vpop.f32.mrf.mxu0
      %794 = vmatprep.mubr.bf16.mxu0 0
      %795 = vmatmul.mubr.bf16.gmra.mxu0 %v581
      %v796 = vpop.f32.mrf.mxu0
      %v797 = vadd.f32 0.0, %v796
      %v798 = vpop.f32.mrf.mxu0
      %v799 = vpop.f32.mrf.mxu0
      %v800 = vadd.f32 0.0, %v799
      %v801 = vpop.f32.mrf.mxu0
      %802 = vmatprep.mubr.bf16.mxu0 0
      %803 = vmatmul.mubr.bf16.gmra.mxu0 %v584
      %v804 = vpop.f32.mrf.mxu0
      %v805 = vadd.f32 0.0, %v804
      %v806 = vpop.f32.mrf.mxu0
      %v807 = vpop.f32.mrf.mxu0
      %v808 = vadd.f32 0.0, %v807
      %v809 = vpop.f32.mrf.mxu0
      %810 = vmatprep.mubr.bf16.mxu0 0
      %811 = vmatmul.mubr.bf16.gmra.mxu0 %v587
      %v812 = vpop.f32.mrf.mxu0
      %v813 = vadd.f32 0.0, %v812
      %v814 = vpop.f32.mrf.mxu0
      %v815 = vpop.f32.mrf.mxu0
      %v816 = vadd.f32 0.0, %v815
      %v817 = vpop.f32.mrf.mxu0
      %818 = vdwg.mxu0
      %819 = vst.msk [vmem:[%s307] sm:$0xff] %vm690, %v757
      %820 = vst.msk [vmem:[%s307 + $0x8] sm:$0xff] %vm690, %v760
      %821 = vst.msk [vmem:[%s307 + $0x10] sm:$0xff] %vm690, %v765
      %822 = vst.msk [vmem:[%s307 + $0x18] sm:$0xff] %vm690, %v768
      %823 = vst.msk [vmem:[%s307 + $0x20] sm:$0xff] %vm690, %v773
      %824 = vst.msk [vmem:[%s307 + $0x28] sm:$0xff] %vm690, %v776
      %825 = vst.msk [vmem:[%s307 + $0x30] sm:$0xff] %vm690, %v781
      %826 = vst.msk [vmem:[%s307 + $0x38] sm:$0xff] %vm690, %v784
      %827 = vst.msk [vmem:[%s307 + $0x40] sm:$0xff] %vm690, %v789
      %828 = vst.msk [vmem:[%s307 + $0x48] sm:$0xff] %vm690, %v792
      %829 = vst.msk [vmem:[%s307 + $0x50] sm:$0xff] %vm690, %v797
      %830 = vst.msk [vmem:[%s307 + $0x58] sm:$0xff] %vm690, %v800
      %831 = vst.msk [vmem:[%s307 + $0x60] sm:$0xff] %vm690, %v805
      %832 = vst.msk [vmem:[%s307 + $0x68] sm:$0xff] %vm690, %v808
      %833 = vst.msk [vmem:[%s307 + $0x70] sm:$0xff] %vm690, %v813
      %834 = vst.msk [vmem:[%s307 + $0x78] sm:$0xff] %vm690, %v816
      %s835 = smul.u32 16, %s19
      %p836 = scmp.lt.s32.totalorder %s835, 31
      %s837 = scalar_select %p836, %s835, 31
      %s838 = smul.addr %s837, 4
      %s839 = scalar_lea.vmem %s5, %s838
      %s840 = smul.u32 16, %s19
      %p841 = scmp.lt.s32.totalorder %s840, 31
      %s842 = scalar_select %p841, %s840, 31
      %s843 = smul.addr %s842, 8
      %s844 = scalar_lea.vmem %s6, %s843
      %s845 = smul.u32 16, %s19
      %p846 = scmp.lt.s32.totalorder %s845, 31
      %s847 = scalar_select %p846, %s845, 31
      %s848 = smul.addr %s847, 8
      %s849 = scalar_lea.vmem %s7, %s848
      // Predicated region
      $region41: #{tpu_custom_call.1} parent=39 // pred_check
        %p850 = pneg %p147
      $region42: #{tpu_custom_call.1} parent=39 // pred_check_branch
        %852 = sbr.rel (%p850) target = $region44
      $region43: #{tpu_custom_call.1} parent=39 // pred_region
        %s853 = smul.u32 16, %s19
      $region44: #{tpu_custom_call.1} parent=39 // pred_fallthru
        _
      // Predicated region
      $region45: #{tpu_custom_call.1} parent=39 // pred_check
        %p854 = pneg %p173
      $region46: #{tpu_custom_call.1} parent=39 // pred_check_branch
        %856 = sbr.rel (%p854) target = $region48
      $region47: #{tpu_custom_call.1} parent=39 // pred_region
        %s857 = smul.u32 16, %s19
      $region48: #{tpu_custom_call.1} parent=39 // pred_fallthru
        _
      // Predicated region
      $region49: #{tpu_custom_call.1} parent=39 // pred_check
        %p858 = pneg %p199
      $region50: #{tpu_custom_call.1} parent=39 // pred_check_branch
        %860 = sbr.rel (%p858) target = $region52
      $region51: #{tpu_custom_call.1} parent=39 // pred_region
        %s861 = smul.u32 16, %s19
      $region52: #{tpu_custom_call.1} parent=39 // pred_fallthru
        _
    $region40: #{tpu_custom_call.1} parent=5 // pred_fallthru
      _
    %p862 = scmp.le.s32.totalorder 2, %s14
    // Predicated region
    $region53: #{tpu_custom_call.1} parent=5 // pred_check
      %p863 = pneg %p862
    $region54: #{tpu_custom_call.1} parent=5 // pred_check_branch
      %865 = sbr.rel (%p863) target = $region56
    $region55: #{tpu_custom_call.1} parent=5 // pred_region
      %s866 = ssub.s32 %s14, 2
      // Predicated region
      $region57: #{tpu_custom_call.1} parent=55 // pred_check
        %p867 = pneg %p153
      $region58: #{tpu_custom_call.1} parent=55 // pred_check_branch
        %869 = sbr.rel (%p867) target = $region60
      $region59: #{tpu_custom_call.1} parent=55 // pred_region
        %s870 = smul.u32 16, %s20
        %p871 = scmp.lt.s32.totalorder %s870, 31
        %s872 = scalar_select %p871, %s870, 31
        %s873 = smul.addr %s872, 4
        %s874 = scalar_lea.vmem %s5, %s873
      $region60: #{tpu_custom_call.1} parent=55 // pred_fallthru
        _
      // Predicated region
      $region61: #{tpu_custom_call.1} parent=55 // pred_check
        %p875 = pneg %p179
      $region62: #{tpu_custom_call.1} parent=55 // pred_check_branch
        %877 = sbr.rel (%p875) target = $region64
      $region63: #{tpu_custom_call.1} parent=55 // pred_region
        %s878 = smul.u32 16, %s20
        %p879 = scmp.lt.s32.totalorder %s878, 31
        %s880 = scalar_select %p879, %s878, 31
        %s881 = smul.addr %s880, 8
        %s882 = scalar_lea.vmem %s6, %s881
      $region64: #{tpu_custom_call.1} parent=55 // pred_fallthru
        _
      // Predicated region
      $region65: #{tpu_custom_call.1} parent=55 // pred_check
        %p883 = pneg %p205
      $region66: #{tpu_custom_call.1} parent=55 // pred_check_branch
        %885 = sbr.rel (%p883) target = $region68
      $region67: #{tpu_custom_call.1} parent=55 // pred_region
        %s886 = smul.u32 16, %s20
        %p887 = scmp.lt.s32.totalorder %s886, 31
        %s888 = scalar_select %p887, %s886, 31
        %s889 = smul.addr %s888, 8
        %s890 = scalar_lea.vmem %s7, %s889
      $region68: #{tpu_custom_call.1} parent=55 // pred_fallthru
        _
    $region56: #{tpu_custom_call.1} parent=5 // pred_fallthru
      _
  $region6: #{tpu_custom_call.1} parent=0 // loop_footer
    %s18 = sadd.s32 1, %s14
  $region7: #{tpu_custom_call.1} parent=0 // loop_footer_branch
    %13 = sbr.rel target = $region3
  $region8: #{tpu_custom_call.1} parent=0 // loop_exit
    _

</llo_original>
